<compile_context>
chip_gen: v5e
topology: v5e:2x2
jax: 0.10.0
libtpu: 0.0.40
codegen_flags: <defaults>
</compile_context>

<pallas_src>
import math

import jax
import jax.numpy as jnp
from jax.experimental import pallas as pl
from jax.experimental.pallas import tpu as pltpu

LOG_STD_MAX = 2.0
LOG_STD_MIN = -20.0
OUT_W = 128  # lane-dense packed output width: [mu(A) | pi(A) | log_pi(1) | pad]


def actor_kernel(x_ref, noise_ref,
                 w1_ref, b1_ref, w2_ref, b2_ref,
                 w3p_ref, b3p_ref,
                 out_ref):
    A = noise_ref.shape[-1]
    TB = out_ref.shape[0]

    # ---- MLP trunk: bf16 matmuls on the MXU, f32 accumulation ----
    # bf16 intermediates right after bias+ReLU: halves spill/vreg traffic into
    # the next MXU op (the cast was happening at the dot input anyway).
    h1 = jnp.dot(x_ref[...], w1_ref[...],
                 preferred_element_type=jnp.float32) + b1_ref[...]
    h1 = jnp.maximum(h1, 0.0).astype(jnp.bfloat16)

    h2 = jnp.dot(h1, w2_ref[...],
                 preferred_element_type=jnp.float32) + b2_ref[...]
    h2 = jnp.maximum(h2, 0.0).astype(jnp.bfloat16)

    # ---- fused head: single lane-aligned matmul, cols = [mu | log_std | 0...] ----
    head = jnp.dot(h2, w3p_ref[...],
                   preferred_element_type=jnp.float32) + b3p_ref[...]
    mu = head[:, 0:A]
    log_std = head[:, A:2 * A]

    # squash log_std into [LOG_STD_MIN, LOG_STD_MAX]
    log_std = jnp.tanh(log_std)
    log_std = LOG_STD_MIN + 0.5 * (LOG_STD_MAX - LOG_STD_MIN) * (log_std + 1.0)

    # pi = mu + noise * std
    std = jnp.exp(log_std)
    noise = noise_ref[...]
    pi = mu + noise * std

    # gaussian_likelihood(noise, log_std); constant term folded at trace time
    gauss_const = -0.5 * math.log(2.0 * math.pi) * A
    pre_sum = -0.5 * noise * noise - log_std
    log_pi = jnp.sum(pre_sum, axis=-1, keepdims=True) + gauss_const

    # apply_squashing_func
    mu_t = jnp.tanh(mu)
    pi_t = jnp.tanh(pi)
    correction = jnp.log(jnp.maximum(1.0 - pi_t * pi_t, 0.0) + 1e-6)
    log_pi = log_pi - jnp.sum(correction, axis=-1, keepdims=True)

    # ---- compose the full lane-dense slab in registers: ONE unmasked store ----
    pad = jnp.zeros((TB, OUT_W - 2 * A - 1), jnp.float32)
    out_ref[...] = jnp.concatenate([mu_t, pi_t, log_pi, pad], axis=-1)


def _round_up(n, m):
    return ((n + m - 1) // m) * m


def _pick_batch_tile(B, cap=256, align=16):
    """Batch tile: multiple of 16 (bf16 sublane packing), capped at `cap`,
    and chosen so the grid has >= 2 steps when B allows (v7x has 2 TCs)."""
    B_a = _round_up(B, align)
    TB = min(cap, B_a)
    if B_a // TB < 2 and B_a >= 2 * align:
        TB = _round_up((B_a + 1) // 2, align)
    return TB


def actor_forward(x, params, noise):
    """Actor forward pass (compute_pi=True, compute_log_pi=True)."""
    w1, b1, w2, b2, w3p, b3p = params
    B, S = x.shape
    H = w1.shape[1]
    A = noise.shape[-1]

    TB = _pick_batch_tile(B)
    B_pad = _round_up(B, TB)

    # cast x to bf16 in the wrapper: halves the per-step x DMA bytes
    x = x.astype(jnp.bfloat16)
    if B_pad != B:
        x = jnp.pad(x, ((0, B_pad - B), (0, 0)))
        noise = jnp.pad(noise, ((0, B_pad - B), (0, 0)))

    const = lambda i: (0, 0)  # weights/biases: same block every step -> VMEM-resident

    bytes_accessed = (x.size * 2 + noise.size * 4 + B_pad * OUT_W * 4
                      + w1.size * 2 + w2.size * 2 + w3p.size * 2
                      + (b1.size + b2.size + b3p.size) * 4)
    cost = pl.CostEstimate(
        flops=2 * B_pad * (S * H + H * H + H * OUT_W),
        transcendentals=5 * A * B_pad,
        bytes_accessed=int(bytes_accessed))

    out = pl.pallas_call(
        actor_kernel,
        out_shape=jax.ShapeDtypeStruct((B_pad, OUT_W), jnp.float32),
        grid=(B_pad // TB,),
        in_specs=[
            pl.BlockSpec((TB, S), lambda i: (i, 0)),       # x (bf16)
            pl.BlockSpec((TB, A), lambda i: (i, 0)),       # noise (f32)
            pl.BlockSpec((S, H), const),                   # w1 (bf16)
            pl.BlockSpec((1, H), const),                   # b1
            pl.BlockSpec((H, H), const),                   # w2 (bf16)
            pl.BlockSpec((1, H), const),                   # b2
            pl.BlockSpec((H, OUT_W), const),               # w3 packed [mu|logstd|0] (bf16)
            pl.BlockSpec((1, OUT_W), const),               # b3 packed
        ],
        out_specs=pl.BlockSpec((TB, OUT_W), lambda i: (i, 0)),
        compiler_params=pltpu.CompilerParams(
            dimension_semantics=("parallel",)),
        cost_estimate=cost,
    )(x, noise, w1, b1, w2, b2, w3p, b3p)

    mu = out[:B, :A]
    pi = out[:B, A:2 * A]
    log_pi = out[:B, 2 * A:2 * A + 1]
    return mu, pi, log_pi


def init_actor_params(key, state_dim, action_dim, hidden=256):
    """Mirrors weight_init: orthogonal weights, zero bias.

    Weights stored bf16 (MXU-native, halves weight HBM traffic), biases f32.
    Final layer is packed into a single zero-padded (hidden, OUT_W) weight with
    columns [w3_mu(A) | w3_logstd(A) | 0...] so the head is one fused matmul.
    """
    k1, k2, k3 = jax.random.split(key, 3)
    ortho = jax.nn.initializers.orthogonal()
    w1 = ortho(k1, (state_dim, hidden), jnp.float32)
    w2 = ortho(k2, (hidden, hidden), jnp.float32)
    w3 = ortho(k3, (hidden, 2 * action_dim), jnp.float32)
    w3p = jnp.zeros((hidden, OUT_W), jnp.float32).at[:, :2 * action_dim].set(w3)
    b3p = jnp.zeros((1, OUT_W), jnp.float32)
    return (w1.astype(jnp.bfloat16), jnp.zeros((1, hidden), jnp.float32),
            w2.astype(jnp.bfloat16), jnp.zeros((1, hidden), jnp.float32),
            w3p.astype(jnp.bfloat16), b3p)


def actor_forward_ref(x, params, noise):
    """Pure-JAX reference with identical bf16 matmul precision path."""
    w1, b1, w2, b2, w3p, b3p = params
    A = noise.shape[-1]
    h = jnp.dot(x.astype(jnp.bfloat16), w1,
                preferred_element_type=jnp.float32) + b1
    h = jax.nn.relu(h).astype(jnp.bfloat16)
    h = jnp.dot(h, w2, preferred_element_type=jnp.float32) + b2
    h = jax.nn.relu(h).astype(jnp.bfloat16)
    head = jnp.dot(h, w3p, preferred_element_type=jnp.float32) + b3p
    mu, log_std = head[:, :A], head[:, A:2 * A]
    log_std = jnp.tanh(log_std)
    log_std = LOG_STD_MIN + 0.5 * (LOG_STD_MAX - LOG_STD_MIN) * (log_std + 1.0)
    std = jnp.exp(log_std)
    pi = mu + noise * std
    log_pi = jnp.sum(-0.5 * noise ** 2 - log_std, axis=-1, keepdims=True) \
        - 0.5 * math.log(2.0 * math.pi) * A
    mu_t, pi_t = jnp.tanh(mu), jnp.tanh(pi)
    log_pi = log_pi - jnp.sum(
        jnp.log(jax.nn.relu(1.0 - pi_t ** 2) + 1e-6), axis=-1, keepdims=True)
    return mu_t, pi_t, log_pi


if __name__ == "__main__":
    B, STATE_DIM, ACTION_DIM = 8, 32, 4

    key = jax.random.PRNGKey(0)
    k_x, k_noise, k_params = jax.random.split(key, 3)

    x = jax.random.normal(k_x, (B, STATE_DIM), jnp.float32)
    noise = jax.random.normal(k_noise, (B, ACTION_DIM), jnp.float32)
    params = init_actor_params(k_params, STATE_DIM, ACTION_DIM)

    mu, pi, log_pi = actor_forward(x, params, noise)
    jax.block_until_ready((mu, pi, log_pi))

    # correctness check against a pure-JAX reference with the same precision
    mu_r, pi_r, log_pi_r = actor_forward_ref(x, params, noise)
    assert mu.shape == (B, ACTION_DIM) and pi.shape == (B, ACTION_DIM)
    assert log_pi.shape == (B, 1)
    assert jnp.allclose(mu, mu_r, atol=1e-2), jnp.max(jnp.abs(mu - mu_r))
    assert jnp.allclose(pi, pi_r, atol=1e-2), jnp.max(jnp.abs(pi - pi_r))
    assert jnp.allclose(log_pi, log_pi_r, atol=5e-2), jnp.max(jnp.abs(log_pi - log_pi_r))

    print("KERNEL_OK")
</pallas_src>

<mosaic_0001>
module attributes {stable_mosaic.version = 11 : i64} {
  func.func @actor_kernel(%arg0: i32, %arg1: memref<16x32xbf16, #tpu.memory_space<vmem>>, %arg2: memref<16x4xf32, #tpu.memory_space<vmem>>, %arg3: memref<32x256xbf16, #tpu.memory_space<vmem>>, %arg4: memref<1x256xf32, #tpu.memory_space<vmem>>, %arg5: memref<256x256xbf16, #tpu.memory_space<vmem>>, %arg6: memref<1x256xf32, #tpu.memory_space<vmem>>, %arg7: memref<256x128xbf16, #tpu.memory_space<vmem>>, %arg8: memref<1x128xf32, #tpu.memory_space<vmem>>, %arg9: memref<16x128xf32, #tpu.memory_space<vmem>>) attributes {dimension_semantics = [#tpu.dimension_semantics<parallel>], iteration_bounds = array<i64: 1>, scalar_prefetch = 0 : i64, scratch_operands = 0 : i64, tpu.core_type = #tpu.core_type<tc>, window_params = [{transform_indices = @transform_0, window_bounds = array<i64: 16, 32>}, {transform_indices = @transform_1, window_bounds = array<i64: 16, 4>}, {pipeline_mode = #tpu.pipeline_mode<synchronous>, transform_indices = @transform_2, window_bounds = array<i64: 32, 256>}, {pipeline_mode = #tpu.pipeline_mode<synchronous>, transform_indices = @transform_3, window_bounds = array<i64: 1, 256>}, {pipeline_mode = #tpu.pipeline_mode<synchronous>, transform_indices = @transform_4, window_bounds = array<i64: 256, 256>}, {pipeline_mode = #tpu.pipeline_mode<synchronous>, transform_indices = @transform_5, window_bounds = array<i64: 1, 256>}, {pipeline_mode = #tpu.pipeline_mode<synchronous>, transform_indices = @transform_6, window_bounds = array<i64: 256, 128>}, {pipeline_mode = #tpu.pipeline_mode<synchronous>, transform_indices = @transform_7, window_bounds = array<i64: 1, 128>}, {transform_indices = @transform_8, window_bounds = array<i64: 16, 128>}]} {
    %c0 = arith.constant 0 : index
    %c0_0 = arith.constant 0 : index
    %0 = vector.load %arg1[%c0, %c0_0] : memref<16x32xbf16, #tpu.memory_space<vmem>>, vector<16x32xbf16>
    %c0_1 = arith.constant 0 : index
    %c0_2 = arith.constant 0 : index
    %1 = vector.load %arg3[%c0_1, %c0_2] : memref<32x256xbf16, #tpu.memory_space<vmem>>, vector<32x256xbf16>
    %cst = arith.constant dense<0.000000e+00> : vector<16x256xf32>
    %2 = tpu.matmul %0, %1, %cst {dimension_numbers = #tpu.dot_dimension_numbers<[1], [0], [0], [1], [0, 0, 1, 1], [], []>} : vector<16x32xbf16>, vector<32x256xbf16>, vector<16x256xf32> -> vector<16x256xf32>
    %c0_3 = arith.constant 0 : index
    %c0_4 = arith.constant 0 : index
    %3 = vector.load %arg4[%c0_3, %c0_4] : memref<1x256xf32, #tpu.memory_space<vmem>>, vector<1x256xf32>
    %4 = vector.broadcast %3 : vector<1x256xf32> to vector<16x256xf32>
    %5 = arith.addf %2, %4 : vector<16x256xf32>
    %cst_5 = arith.constant 0.000000e+00 : f32
    %6 = vector.broadcast %cst_5 : f32 to vector<16x256xf32>
    %7 = arith.maximumf %5, %6 : vector<16x256xf32>
    %8 = arith.truncf %7 : vector<16x256xf32> to vector<16x256xbf16>
    %c0_6 = arith.constant 0 : index
    %c0_7 = arith.constant 0 : index
    %9 = vector.load %arg5[%c0_6, %c0_7] : memref<256x256xbf16, #tpu.memory_space<vmem>>, vector<256x256xbf16>
    %cst_8 = arith.constant dense<0.000000e+00> : vector<16x256xf32>
    %10 = tpu.matmul %8, %9, %cst_8 {dimension_numbers = #tpu.dot_dimension_numbers<[1], [0], [0], [1], [0, 0, 1, 1], [], []>} : vector<16x256xbf16>, vector<256x256xbf16>, vector<16x256xf32> -> vector<16x256xf32>
    %c0_9 = arith.constant 0 : index
    %c0_10 = arith.constant 0 : index
    %11 = vector.load %arg6[%c0_9, %c0_10] : memref<1x256xf32, #tpu.memory_space<vmem>>, vector<1x256xf32>
    %12 = vector.broadcast %11 : vector<1x256xf32> to vector<16x256xf32>
    %13 = arith.addf %10, %12 : vector<16x256xf32>
    %cst_11 = arith.constant 0.000000e+00 : f32
    %14 = vector.broadcast %cst_11 : f32 to vector<16x256xf32>
    %15 = arith.maximumf %13, %14 : vector<16x256xf32>
    %16 = arith.truncf %15 : vector<16x256xf32> to vector<16x256xbf16>
    %c0_12 = arith.constant 0 : index
    %c0_13 = arith.constant 0 : index
    %17 = vector.load %arg7[%c0_12, %c0_13] : memref<256x128xbf16, #tpu.memory_space<vmem>>, vector<256x128xbf16>
    %cst_14 = arith.constant dense<0.000000e+00> : vector<16x128xf32>
    %18 = tpu.matmul %16, %17, %cst_14 {dimension_numbers = #tpu.dot_dimension_numbers<[1], [0], [0], [1], [0, 0, 1, 1], [], []>} : vector<16x256xbf16>, vector<256x128xbf16>, vector<16x128xf32> -> vector<16x128xf32>
    %c0_15 = arith.constant 0 : index
    %c0_16 = arith.constant 0 : index
    %19 = vector.load %arg8[%c0_15, %c0_16] : memref<1x128xf32, #tpu.memory_space<vmem>>, vector<1x128xf32>
    %20 = vector.broadcast %19 : vector<1x128xf32> to vector<16x128xf32>
    %21 = arith.addf %18, %20 : vector<16x128xf32>
    %22 = vector.extract_strided_slice %21 {offsets = [0, 0], sizes = [16, 4], strides = [1, 1]} : vector<16x128xf32> to vector<16x4xf32>
    %23 = vector.extract_strided_slice %21 {offsets = [0, 4], sizes = [16, 4], strides = [1, 1]} : vector<16x128xf32> to vector<16x4xf32>
    %24 = math.tanh %23 : vector<16x4xf32>
    %cst_17 = arith.constant 1.000000e+00 : f32
    %25 = vector.broadcast %cst_17 : f32 to vector<16x4xf32>
    %26 = arith.addf %24, %25 : vector<16x4xf32>
    %cst_18 = arith.constant 1.100000e+01 : f32
    %27 = vector.broadcast %cst_18 : f32 to vector<16x4xf32>
    %28 = arith.mulf %27, %26 : vector<16x4xf32>
    %cst_19 = arith.constant -2.000000e+01 : f32
    %29 = vector.broadcast %cst_19 : f32 to vector<16x4xf32>
    %30 = arith.addf %29, %28 : vector<16x4xf32>
    %31 = math.exp %30 : vector<16x4xf32>
    %c0_20 = arith.constant 0 : index
    %c0_21 = arith.constant 0 : index
    %32 = vector.load %arg2[%c0_20, %c0_21] : memref<16x4xf32, #tpu.memory_space<vmem>>, vector<16x4xf32>
    %33 = arith.mulf %32, %31 : vector<16x4xf32>
    %34 = arith.addf %22, %33 : vector<16x4xf32>
    %cst_22 = arith.constant -5.000000e-01 : f32
    %35 = vector.broadcast %cst_22 : f32 to vector<16x4xf32>
    %36 = arith.mulf %35, %32 : vector<16x4xf32>
    %37 = arith.mulf %36, %32 : vector<16x4xf32>
    %38 = arith.subf %37, %30 : vector<16x4xf32>
    %cst_23 = arith.constant dense<0.000000e+00> : vector<16xf32>
    %39 = vector.multi_reduction <add>, %38, %cst_23 [1] : vector<16x4xf32> to vector<16xf32>
    %40 = vector.shape_cast %39 : vector<16xf32> to vector<16x1xf32>
    %cst_24 = arith.constant -3.67575407 : f32
    %41 = vector.broadcast %cst_24 : f32 to vector<16x1xf32>
    %42 = arith.addf %40, %41 : vector<16x1xf32>
    %43 = math.tanh %22 : vector<16x4xf32>
    %44 = math.tanh %34 : vector<16x4xf32>
    %45 = arith.mulf %44, %44 : vector<16x4xf32>
    %cst_25 = arith.constant 1.000000e+00 : f32
    %46 = vector.broadcast %cst_25 : f32 to vector<16x4xf32>
    %47 = arith.subf %46, %45 : vector<16x4xf32>
    %cst_26 = arith.constant 0.000000e+00 : f32
    %48 = vector.broadcast %cst_26 : f32 to vector<16x4xf32>
    %49 = arith.maximumf %47, %48 : vector<16x4xf32>
    %cst_27 = arith.constant 9.99999997E-7 : f32
    %50 = vector.broadcast %cst_27 : f32 to vector<16x4xf32>
    %51 = arith.addf %49, %50 : vector<16x4xf32>
    %52 = math.log %51 : vector<16x4xf32>
    %cst_28 = arith.constant dense<0.000000e+00> : vector<16xf32>
    %53 = vector.multi_reduction <add>, %52, %cst_28 [1] : vector<16x4xf32> to vector<16xf32>
    %54 = vector.shape_cast %53 : vector<16xf32> to vector<16x1xf32>
    %55 = arith.subf %42, %54 : vector<16x1xf32>
    %cst_29 = arith.constant 0.000000e+00 : f32
    %56 = vector.broadcast %cst_29 : f32 to vector<16x119xf32>
    %57 = tpu.concatenate %43, %44, %55, %56 in 1 : vector<16x4xf32>, vector<16x4xf32>, vector<16x1xf32>, vector<16x119xf32> -> vector<16x128xf32>
    %c0_30 = arith.constant 0 : index
    %c0_31 = arith.constant 0 : index
    %58 = vector.load %arg9[%c0_30, %c0_31] : memref<16x128xf32, #tpu.memory_space<vmem>>, vector<16x128xf32>
    tpu.vector_store %arg9[%c0_30, %c0_31], %57 {strides = array<i32>} : memref<16x128xf32, #tpu.memory_space<vmem>>, vector<16x128xf32>,
    return
  }
  func.func @transform_0(%arg0: i32) -> (i32, i32) {
    %c0_i32 = arith.constant 0 : i32
    %c0_i32_0 = arith.constant 0 : i32
    return %arg0, %c0_i32 : i32, i32
  }
  func.func @transform_1(%arg0: i32) -> (i32, i32) {
    %c0_i32 = arith.constant 0 : i32
    %c0_i32_0 = arith.constant 0 : i32
    return %arg0, %c0_i32 : i32, i32
  }
  func.func @transform_2(%arg0: i32) -> (i32, i32) {
    %c0_i32 = arith.constant 0 : i32
    %c0_i32_0 = arith.constant 0 : i32
    %c0_i32_1 = arith.constant 0 : i32
    return %c0_i32, %c0_i32_0 : i32, i32
  }
  func.func @transform_3(%arg0: i32) -> (i32, i32) {
    %c0_i32 = arith.constant 0 : i32
    %c0_i32_0 = arith.constant 0 : i32
    %c0_i32_1 = arith.constant 0 : i32
    return %c0_i32, %c0_i32_0 : i32, i32
  }
  func.func @transform_4(%arg0: i32) -> (i32, i32) {
    %c0_i32 = arith.constant 0 : i32
    %c0_i32_0 = arith.constant 0 : i32
    %c0_i32_1 = arith.constant 0 : i32
    return %c0_i32, %c0_i32_0 : i32, i32
  }
  func.func @transform_5(%arg0: i32) -> (i32, i32) {
    %c0_i32 = arith.constant 0 : i32
    %c0_i32_0 = arith.constant 0 : i32
    %c0_i32_1 = arith.constant 0 : i32
    return %c0_i32, %c0_i32_0 : i32, i32
  }
  func.func @transform_6(%arg0: i32) -> (i32, i32) {
    %c0_i32 = arith.constant 0 : i32
    %c0_i32_0 = arith.constant 0 : i32
    %c0_i32_1 = arith.constant 0 : i32
    return %c0_i32, %c0_i32_0 : i32, i32
  }
  func.func @transform_7(%arg0: i32) -> (i32, i32) {
    %c0_i32 = arith.constant 0 : i32
    %c0_i32_0 = arith.constant 0 : i32
    %c0_i32_1 = arith.constant 0 : i32
    return %c0_i32, %c0_i32_0 : i32, i32
  }
  func.func @transform_8(%arg0: i32) -> (i32, i32) {
    %c0_i32 = arith.constant 0 : i32
    %c0_i32_0 = arith.constant 0 : i32
    return %arg0, %c0_i32 : i32, i32
  }
}

</mosaic_0001>

<llo_original>
// kernel: tpu_custom_call.1
$region0: #{tpu_custom_call.1}
  #allocation0 [shape = 'u32[]', space=smem, size = 0x4, offset = 0x4, fixed_abs, tag = 'smem constant byte address 0x4 - core index']
  #allocation1 [shape = 'u32[72,128]{1,0:T(1,128)}', space=vmem, size = 0x9000, scoped, tag = 'internal scratch']
  %s0 = inlined_call_operand.vmem [shape: bf16[16,32], index: 0, kind: input, shape index: {}]
  %s1 = inlined_call_operand.vmem [shape: f32[16,4], index: 1, kind: input, shape index: {}]
  %s2 = inlined_call_operand.hbm [shape: bf16[32,256], index: 2, kind: input, shape index: {}]
  %s3 = inlined_call_operand.vmem [shape: f32[1,256], index: 3, kind: input, shape index: {}]
  %s4 = inlined_call_operand.hbm [shape: bf16[256,256], index: 4, kind: input, shape index: {}]
  %s5 = inlined_call_operand.vmem [shape: f32[1,256], index: 5, kind: input, shape index: {}]
  %s6 = inlined_call_operand.hbm [shape: bf16[256,128], index: 6, kind: input, shape index: {}]
  %s7 = inlined_call_operand.vmem [shape: f32[1,128], index: 7, kind: input, shape index: {}]
  %s8 = inlined_call_operand.hbm [shape: f32[16,128], index: 8, kind: output, shape index: {}]
  %s9 = sld [smem:[#allocation0]]
  $region54: #{tpu_custom_call.1} parent=0
    _
  %s11 = ssub.s32 1, %s9
  %s12 = scalar_select 0, %s11, %s9
  $region1: #{tpu_custom_call.1} parent=0
    #allocation2 [shape = 'u8[16384]{0}', space=vmem, size = 0x4000, scoped, tag = 'input window, operand 2, single buffered']
    #allocation3 [shape = 's32[1]{0}', space=sflag, size = 0x4, scoped, tag = 'scoped memory for tpu_custom_call.1']
    #allocation4 [shape = 's32[1]{0}', space=sflag, size = 0x4, scoped, tag = 'scoped memory for tpu_custom_call.1']
    #allocation5 [shape = 'u8[131072]{0}', space=vmem, size = 0x20000, scoped, tag = 'input window, operand 4, single buffered']
    #allocation6 [shape = 's32[1]{0}', space=sflag, size = 0x4, scoped, tag = 'scoped memory for tpu_custom_call.1']
    #allocation7 [shape = 'u8[65536]{0}', space=vmem, size = 0x10000, scoped, tag = 'input window, operand 6, single buffered']
    #allocation8 [shape = 'u8[8192]{0}', space=vmem, size = 0x2000, scoped, tag = 'output window, operand 0, single buffered']
    %13 = vsyncpa [#allocation3], 0
    %14 = vsyncpa [#allocation6], 0
    %15 = vsyncpa [#allocation4], 0
    // Predicated region
    $region2: #{tpu_custom_call.1} parent=1 // pred_check
      _
    $region3: #{tpu_custom_call.1} parent=1 // pred_check_branch
      %17 = sbr.rel (0) target = $region5
    $region4: #{tpu_custom_call.1} parent=1 // pred_region
      _
    $region5: #{tpu_custom_call.1} parent=1 // pred_fallthru
      _
    // Predicated region
    $region6: #{tpu_custom_call.1} parent=1 // pred_check
      _
    $region7: #{tpu_custom_call.1} parent=1 // pred_check_branch
      %19 = sbr.rel (0) target = $region9
    $region8: #{tpu_custom_call.1} parent=1 // pred_region
      _
    $region9: #{tpu_custom_call.1} parent=1 // pred_fallthru
      _
    // Predicated region
    $region10: #{tpu_custom_call.1} parent=1 // pred_check
      _
    $region11: #{tpu_custom_call.1} parent=1 // pred_check_branch
      %21 = sbr.rel (0) target = $region13
    $region12: #{tpu_custom_call.1} parent=1 // pred_region
      %23 = vsyncadd [#allocation3], 0
      %s24 = sshll.u32 %s2, 4
      %s25 = int_to_ptr.hbm [resolvable:$true] %s24
      %s26 = sshll.u32 [#allocation2], 4
      %s27 = int_to_ptr.vmem [resolvable:$true] %s26
      %32 = dma.hbm_to_vmem [thread:$0]  %s25, 512, %s27, [#allocation3], 128, 128, 8
    $region13: #{tpu_custom_call.1} parent=1 // pred_fallthru
      _
    // Predicated region
    $region14: #{tpu_custom_call.1} parent=1 // pred_check
      _
    $region15: #{tpu_custom_call.1} parent=1 // pred_check_branch
      %34 = sbr.rel (0) target = $region17
    $region16: #{tpu_custom_call.1} parent=1 // pred_region
      _
    $region17: #{tpu_custom_call.1} parent=1 // pred_fallthru
      _
    // Predicated region
    $region18: #{tpu_custom_call.1} parent=1 // pred_check
      _
    $region19: #{tpu_custom_call.1} parent=1 // pred_check_branch
      %36 = sbr.rel (0) target = $region21
    $region20: #{tpu_custom_call.1} parent=1 // pred_region
      %38 = vsyncadd [#allocation6], 0
      %s39 = sshll.u32 %s4, 4
      %s40 = int_to_ptr.hbm [resolvable:$true] %s39
      %s41 = sshll.u32 [#allocation5], 4
      %s42 = int_to_ptr.vmem [resolvable:$true] %s41
      %47 = dma.hbm_to_vmem [thread:$0]  %s40, 4096, %s42, [#allocation6], 128, 128, 8
    $region21: #{tpu_custom_call.1} parent=1 // pred_fallthru
      _
    // Predicated region
    $region22: #{tpu_custom_call.1} parent=1 // pred_check
      _
    $region23: #{tpu_custom_call.1} parent=1 // pred_check_branch
      %49 = sbr.rel (0) target = $region25
    $region24: #{tpu_custom_call.1} parent=1 // pred_region
      _
    $region25: #{tpu_custom_call.1} parent=1 // pred_fallthru
      _
    // Predicated region
    $region26: #{tpu_custom_call.1} parent=1 // pred_check
      _
    $region27: #{tpu_custom_call.1} parent=1 // pred_check_branch
      %51 = sbr.rel (0) target = $region29
    $region28: #{tpu_custom_call.1} parent=1 // pred_region
      %53 = vsyncadd [#allocation6], 0
      %s54 = sshll.u32 %s6, 4
      %s55 = int_to_ptr.hbm [resolvable:$true] %s54
      %s56 = sshll.u32 [#allocation7], 4
      %s57 = int_to_ptr.vmem [resolvable:$true] %s56
      %62 = dma.hbm_to_vmem [thread:$0]  %s55, 2048, %s57, [#allocation6], 64, 64, 4
    $region29: #{tpu_custom_call.1} parent=1 // pred_fallthru
      _
    // Predicated region
    $region30: #{tpu_custom_call.1} parent=1 // pred_check
      _
    $region31: #{tpu_custom_call.1} parent=1 // pred_check_branch
      %64 = sbr.rel (0) target = $region33
    $region32: #{tpu_custom_call.1} parent=1 // pred_region
      _
    $region33: #{tpu_custom_call.1} parent=1 // pred_fallthru
      _
    // Predicated region
    $region34: #{tpu_custom_call.1} parent=1 // pred_check
      _
    $region35: #{tpu_custom_call.1} parent=1 // pred_check_branch
      %66 = sbr.rel (0) target = $region37
    $region36: #{tpu_custom_call.1} parent=1 // pred_region
      %68 = dma.done [#allocation3], 512
    $region37: #{tpu_custom_call.1} parent=1 // pred_fallthru
      _
    // Predicated region
    $region38: #{tpu_custom_call.1} parent=1 // pred_check
      _
    $region39: #{tpu_custom_call.1} parent=1 // pred_check_branch
      %70 = sbr.rel (0) target = $region41
    $region40: #{tpu_custom_call.1} parent=1 // pred_region
      %72 = dma.done [#allocation6], 4096
    $region41: #{tpu_custom_call.1} parent=1 // pred_fallthru
      _
    // Predicated region
    $region42: #{tpu_custom_call.1} parent=1 // pred_check
      _
    $region43: #{tpu_custom_call.1} parent=1 // pred_check_branch
      %74 = sbr.rel (0) target = $region45
    $region44: #{tpu_custom_call.1} parent=1 // pred_region
      %76 = dma.done [#allocation6], 2048
    $region45: #{tpu_custom_call.1} parent=1 // pred_fallthru
      _
    %v78 = vld [vmem:[%s0] sm:$0xf]
    %v79 = vld [vmem:[%s0 + $0x4] sm:$0xf]
    %v80 = vld [vmem:[#allocation2] sm:$0xff]
    %v81 = vld [vmem:[#allocation2 + $0x8] sm:$0xff]
    %v82 = vld [vmem:[#allocation2 + $0x10] sm:$0xff]
    %v83 = vld [vmem:[#allocation2 + $0x18] sm:$0xff]
    %v84 = vld [vmem:[%s3] sm:$0x3]
    %v86 = vperm.slane %v84, 0
    %v87 = vperm.slane %v84, 1
    %v92 = vunpack.c.l.b16 %v78
    %v93 = vunpack.c.l.b16 %v79
    %v94 = vpack.c.b16 %v93, %v92
    %v99 = vunpack.c.l.b16 %v80
    %v100 = vunpack.c.h.b16 %v80
    %v101 = vunpack.c.l.b16 %v81
    %v102 = vunpack.c.h.b16 %v81
    %v103 = vunpack.c.l.b16 %v82
    %v104 = vunpack.c.h.b16 %v82
    %v105 = vunpack.c.l.b16 %v83
    %v106 = vunpack.c.h.b16 %v83
    %v107 = vpack.c.b16 %v101, %v99
    %v108 = vpack.c.b16 %v102, %v100
    %v109 = vpack.c.b16 %v105, %v103
    %v110 = vpack.c.b16 %v106, %v104
    %vm115 = vcmask 261120
    %v117 = vsel %vm115, %v94, 0
    %119 = vmatpush.bf16.msra.mxu0 0
    %120 = vmatpush.bf16.msra.mxu0 0
    %121 = vmatpush.bf16.msra.mxu0 0
    %122 = vmatpush.bf16.msra.mxu0 0
    %123 = vmatpush.bf16.msra.mxu0 0
    %124 = vmatpush.bf16.msra.mxu0 0
    %125 = vmatpush.bf16.msra.mxu0 %v109
    %126 = vmatpush.bf16.msra.mxu0 %v107
    %127 = vmatmul.bf16.gmra.mxu0 %v117
    %v128 = vpop.f32.mrf.mxu0
    %v129 = vadd.f32 %v86, %v128
    %v130 = vpop.f32.mrf.mxu0
    %v131 = vadd.f32 %v86, %v130
    %132 = vdwg.mxu0
    %133 = vmatpush.bf16.msra.mxu0 0
    %134 = vmatpush.bf16.msra.mxu0 0
    %135 = vmatpush.bf16.msra.mxu0 0
    %136 = vmatpush.bf16.msra.mxu0 0
    %137 = vmatpush.bf16.msra.mxu0 0
    %138 = vmatpush.bf16.msra.mxu0 0
    %139 = vmatpush.bf16.msra.mxu0 %v110
    %140 = vmatpush.bf16.msra.mxu0 %v108
    %141 = vmatmul.bf16.gmra.mxu0 %v117
    %v142 = vpop.f32.mrf.mxu0
    %v143 = vadd.f32 %v87, %v142
    %v144 = vpop.f32.mrf.mxu0
    %v145 = vadd.f32 %v87, %v144
    %146 = vdwg.mxu0
    %v147 = vmax.f32 %v129, 0.0
    %v148 = vmax.f32 %v143, 0.0
    %v149 = vmax.f32 %v131, 0.0
    %v150 = vmax.f32 %v145, 0.0
    %v151 = vpack.c.bf16 %v149, %v147
    %v152 = vpack.c.bf16 %v150, %v148
    %v153 = vld [vmem:[#allocation5] sm:$0xff]
    %v154 = vld [vmem:[#allocation5 + $0x8] sm:$0xff]
    %v155 = vld [vmem:[#allocation5 + $0x10] sm:$0xff]
    %v156 = vld [vmem:[#allocation5 + $0x18] sm:$0xff]
    %v157 = vld [vmem:[#allocation5 + $0x20] sm:$0xff]
    %v158 = vld [vmem:[#allocation5 + $0x28] sm:$0xff]
    %v159 = vld [vmem:[#allocation5 + $0x30] sm:$0xff]
    %v160 = vld [vmem:[#allocation5 + $0x38] sm:$0xff]
    %v161 = vld [vmem:[#allocation5 + $0x40] sm:$0xff]
    %v162 = vld [vmem:[#allocation5 + $0x48] sm:$0xff]
    %v163 = vld [vmem:[#allocation5 + $0x50] sm:$0xff]
    %v164 = vld [vmem:[#allocation5 + $0x58] sm:$0xff]
    %v165 = vld [vmem:[#allocation5 + $0x60] sm:$0xff]
    %v166 = vld [vmem:[#allocation5 + $0x68] sm:$0xff]
    %v167 = vld [vmem:[#allocation5 + $0x70] sm:$0xff]
    %v168 = vld [vmem:[#allocation5 + $0x78] sm:$0xff]
    %v169 = vld [vmem:[#allocation5 + $0x80] sm:$0xff]
    %v170 = vld [vmem:[#allocation5 + $0x88] sm:$0xff]
    %v171 = vld [vmem:[#allocation5 + $0x90] sm:$0xff]
    %v172 = vld [vmem:[#allocation5 + $0x98] sm:$0xff]
    %v173 = vld [vmem:[#allocation5 + $0xa0] sm:$0xff]
    %v174 = vld [vmem:[#allocation5 + $0xa8] sm:$0xff]
    %v175 = vld [vmem:[#allocation5 + $0xb0] sm:$0xff]
    %v176 = vld [vmem:[#allocation5 + $0xb8] sm:$0xff]
    %v177 = vld [vmem:[#allocation5 + $0xc0] sm:$0xff]
    %v178 = vld [vmem:[#allocation5 + $0xc8] sm:$0xff]
    %v179 = vld [vmem:[#allocation5 + $0xd0] sm:$0xff]
    %v180 = vld [vmem:[#allocation5 + $0xd8] sm:$0xff]
    %v181 = vld [vmem:[#allocation5 + $0xe0] sm:$0xff]
    %v182 = vld [vmem:[#allocation5 + $0xe8] sm:$0xff]
    %v183 = vld [vmem:[#allocation5 + $0xf0] sm:$0xff]
    %v184 = vld [vmem:[#allocation5 + $0xf8] sm:$0xff]
    %v185 = vld [vmem:[%s5] sm:$0x3]
    %v187 = vperm.slane %v185, 0
    %v188 = vperm.slane %v185, 1
    %v223 = vunpack.c.l.b16 %v153
    %v224 = vunpack.c.h.b16 %v153
    %v225 = vunpack.c.l.b16 %v154
    %v226 = vunpack.c.h.b16 %v154
    %v227 = vunpack.c.l.b16 %v155
    %v228 = vunpack.c.h.b16 %v155
    %v229 = vunpack.c.l.b16 %v156
    %v230 = vunpack.c.h.b16 %v156
    %v231 = vunpack.c.l.b16 %v157
    %v232 = vunpack.c.h.b16 %v157
    %v233 = vunpack.c.l.b16 %v158
    %v234 = vunpack.c.h.b16 %v158
    %v235 = vunpack.c.l.b16 %v159
    %v236 = vunpack.c.h.b16 %v159
    %v237 = vunpack.c.l.b16 %v160
    %v238 = vunpack.c.h.b16 %v160
    %v239 = vunpack.c.l.b16 %v161
    %v240 = vunpack.c.h.b16 %v161
    %v241 = vunpack.c.l.b16 %v162
    %v242 = vunpack.c.h.b16 %v162
    %v243 = vunpack.c.l.b16 %v163
    %v244 = vunpack.c.h.b16 %v163
    %v245 = vunpack.c.l.b16 %v164
    %v246 = vunpack.c.h.b16 %v164
    %v247 = vunpack.c.l.b16 %v165
    %v248 = vunpack.c.h.b16 %v165
    %v249 = vunpack.c.l.b16 %v166
    %v250 = vunpack.c.h.b16 %v166
    %v251 = vunpack.c.l.b16 %v167
    %v252 = vunpack.c.h.b16 %v167
    %v253 = vunpack.c.l.b16 %v168
    %v254 = vunpack.c.h.b16 %v168
    %v255 = vunpack.c.l.b16 %v169
    %v256 = vunpack.c.h.b16 %v169
    %v257 = vunpack.c.l.b16 %v170
    %v258 = vunpack.c.h.b16 %v170
    %v259 = vunpack.c.l.b16 %v171
    %v260 = vunpack.c.h.b16 %v171
    %v261 = vunpack.c.l.b16 %v172
    %v262 = vunpack.c.h.b16 %v172
    %v263 = vunpack.c.l.b16 %v173
    %v264 = vunpack.c.h.b16 %v173
    %v265 = vunpack.c.l.b16 %v174
    %v266 = vunpack.c.h.b16 %v174
    %v267 = vunpack.c.l.b16 %v175
    %v268 = vunpack.c.h.b16 %v175
    %v269 = vunpack.c.l.b16 %v176
    %v270 = vunpack.c.h.b16 %v176
    %v271 = vunpack.c.l.b16 %v177
    %v272 = vunpack.c.h.b16 %v177
    %v273 = vunpack.c.l.b16 %v178
    %v274 = vunpack.c.h.b16 %v178
    %v275 = vunpack.c.l.b16 %v179
    %v276 = vunpack.c.h.b16 %v179
    %v277 = vunpack.c.l.b16 %v180
    %v278 = vunpack.c.h.b16 %v180
    %v279 = vunpack.c.l.b16 %v181
    %v280 = vunpack.c.h.b16 %v181
    %v281 = vunpack.c.l.b16 %v182
    %v282 = vunpack.c.h.b16 %v182
    %v283 = vunpack.c.l.b16 %v183
    %v284 = vunpack.c.h.b16 %v183
    %v285 = vunpack.c.l.b16 %v184
    %v286 = vunpack.c.h.b16 %v184
    %v287 = vpack.c.b16 %v225, %v223
    %v288 = vpack.c.b16 %v226, %v224
    %v289 = vpack.c.b16 %v229, %v227
    %v290 = vpack.c.b16 %v230, %v228
    %v291 = vpack.c.b16 %v233, %v231
    %v292 = vpack.c.b16 %v234, %v232
    %v293 = vpack.c.b16 %v237, %v235
    %v294 = vpack.c.b16 %v238, %v236
    %v295 = vpack.c.b16 %v241, %v239
    %v296 = vpack.c.b16 %v242, %v240
    %v297 = vpack.c.b16 %v245, %v243
    %v298 = vpack.c.b16 %v246, %v244
    %v299 = vpack.c.b16 %v249, %v247
    %v300 = vpack.c.b16 %v250, %v248
    %v301 = vpack.c.b16 %v253, %v251
    %v302 = vpack.c.b16 %v254, %v252
    %v303 = vpack.c.b16 %v257, %v255
    %v304 = vpack.c.b16 %v258, %v256
    %v305 = vpack.c.b16 %v261, %v259
    %v306 = vpack.c.b16 %v262, %v260
    %v307 = vpack.c.b16 %v265, %v263
    %v308 = vpack.c.b16 %v266, %v264
    %v309 = vpack.c.b16 %v269, %v267
    %v310 = vpack.c.b16 %v270, %v268
    %v311 = vpack.c.b16 %v273, %v271
    %v312 = vpack.c.b16 %v274, %v272
    %v313 = vpack.c.b16 %v277, %v275
    %v314 = vpack.c.b16 %v278, %v276
    %v315 = vpack.c.b16 %v281, %v279
    %v316 = vpack.c.b16 %v282, %v280
    %v317 = vpack.c.b16 %v285, %v283
    %v318 = vpack.c.b16 %v286, %v284
    %351 = vmatpush.bf16.msra.mxu0 %v301
    %352 = vmatpush.bf16.msra.mxu0 %v299
    %353 = vmatpush.bf16.msra.mxu0 %v297
    %354 = vmatpush.bf16.msra.mxu0 %v295
    %355 = vmatpush.bf16.msra.mxu0 %v293
    %356 = vmatpush.bf16.msra.mxu0 %v291
    %357 = vmatpush.bf16.msra.mxu0 %v289
    %358 = vmatpush.bf16.msra.mxu0 %v287
    %359 = vmatmul.bf16.gmra.mxu0 %v151
    %v360 = vpop.f32.mrf.mxu0
    %v361 = vadd.f32 %v187, %v360
    %v362 = vpop.f32.mrf.mxu0
    %v363 = vadd.f32 %v187, %v362
    %364 = vdwg.mxu0
    %365 = vmatpush.bf16.msra.mxu0 %v317
    %366 = vmatpush.bf16.msra.mxu0 %v315
    %367 = vmatpush.bf16.msra.mxu0 %v313
    %368 = vmatpush.bf16.msra.mxu0 %v311
    %369 = vmatpush.bf16.msra.mxu0 %v309
    %370 = vmatpush.bf16.msra.mxu0 %v307
    %371 = vmatpush.bf16.msra.mxu0 %v305
    %372 = vmatpush.bf16.msra.mxu0 %v303
    %373 = vmatmul.bf16.gmra.mxu0 %v152
    %v374 = vpop.f32.mrf.mxu0
    %v375 = vadd.f32 %v361, %v374
    %v376 = vpop.f32.mrf.mxu0
    %v377 = vadd.f32 %v363, %v376
    %378 = vdwg.mxu0
    %379 = vmatpush.bf16.msra.mxu0 %v302
    %380 = vmatpush.bf16.msra.mxu0 %v300
    %381 = vmatpush.bf16.msra.mxu0 %v298
    %382 = vmatpush.bf16.msra.mxu0 %v296
    %383 = vmatpush.bf16.msra.mxu0 %v294
    %384 = vmatpush.bf16.msra.mxu0 %v292
    %385 = vmatpush.bf16.msra.mxu0 %v290
    %386 = vmatpush.bf16.msra.mxu0 %v288
    %387 = vmatmul.bf16.gmra.mxu0 %v151
    %v388 = vpop.f32.mrf.mxu0
    %v389 = vadd.f32 %v188, %v388
    %v390 = vpop.f32.mrf.mxu0
    %v391 = vadd.f32 %v188, %v390
    %392 = vdwg.mxu0
    %393 = vmatpush.bf16.msra.mxu0 %v318
    %394 = vmatpush.bf16.msra.mxu0 %v316
    %395 = vmatpush.bf16.msra.mxu0 %v314
    %396 = vmatpush.bf16.msra.mxu0 %v312
    %397 = vmatpush.bf16.msra.mxu0 %v310
    %398 = vmatpush.bf16.msra.mxu0 %v308
    %399 = vmatpush.bf16.msra.mxu0 %v306
    %400 = vmatpush.bf16.msra.mxu0 %v304
    %401 = vmatmul.bf16.gmra.mxu0 %v152
    %v402 = vpop.f32.mrf.mxu0
    %v403 = vadd.f32 %v389, %v402
    %v404 = vpop.f32.mrf.mxu0
    %v405 = vadd.f32 %v391, %v404
    %406 = vdwg.mxu0
    %v407 = vmax.f32 %v375, 0.0
    %v408 = vmax.f32 %v403, 0.0
    %v409 = vmax.f32 %v377, 0.0
    %v410 = vmax.f32 %v405, 0.0
    %v411 = vpack.c.bf16 %v409, %v407
    %v412 = vpack.c.bf16 %v410, %v408
    %v413 = vld [vmem:[#allocation7] sm:$0xf]
    %v414 = vld [vmem:[#allocation7 + $0x4] sm:$0xf]
    %v415 = vld [vmem:[#allocation7 + $0x8] sm:$0xf]
    %v416 = vld [vmem:[#allocation7 + $0xc] sm:$0xf]
    %v417 = vld [vmem:[#allocation7 + $0x10] sm:$0xf]
    %v418 = vld [vmem:[#allocation7 + $0x14] sm:$0xf]
    %v419 = vld [vmem:[#allocation7 + $0x18] sm:$0xf]
    %v420 = vld [vmem:[#allocation7 + $0x1c] sm:$0xf]
    %v421 = vld [vmem:[#allocation7 + $0x20] sm:$0xf]
    %v422 = vld [vmem:[#allocation7 + $0x24] sm:$0xf]
    %v423 = vld [vmem:[#allocation7 + $0x28] sm:$0xf]
    %v424 = vld [vmem:[#allocation7 + $0x2c] sm:$0xf]
    %v425 = vld [vmem:[#allocation7 + $0x30] sm:$0xf]
    %v426 = vld [vmem:[#allocation7 + $0x34] sm:$0xf]
    %v427 = vld [vmem:[#allocation7 + $0x38] sm:$0xf]
    %v428 = vld [vmem:[#allocation7 + $0x3c] sm:$0xf]
    %v429 = vld [vmem:[#allocation7 + $0x40] sm:$0xf]
    %v430 = vld [vmem:[#allocation7 + $0x44] sm:$0xf]
    %v431 = vld [vmem:[#allocation7 + $0x48] sm:$0xf]
    %v432 = vld [vmem:[#allocation7 + $0x4c] sm:$0xf]
    %v433 = vld [vmem:[#allocation7 + $0x50] sm:$0xf]
    %v434 = vld [vmem:[#allocation7 + $0x54] sm:$0xf]
    %v435 = vld [vmem:[#allocation7 + $0x58] sm:$0xf]
    %v436 = vld [vmem:[#allocation7 + $0x5c] sm:$0xf]
    %v437 = vld [vmem:[#allocation7 + $0x60] sm:$0xf]
    %v438 = vld [vmem:[#allocation7 + $0x64] sm:$0xf]
    %v439 = vld [vmem:[#allocation7 + $0x68] sm:$0xf]
    %v440 = vld [vmem:[#allocation7 + $0x6c] sm:$0xf]
    %v441 = vld [vmem:[#allocation7 + $0x70] sm:$0xf]
    %v442 = vld [vmem:[#allocation7 + $0x74] sm:$0xf]
    %v443 = vld [vmem:[#allocation7 + $0x78] sm:$0xf]
    %v444 = vld [vmem:[#allocation7 + $0x7c] sm:$0xf]
    %v445 = vld [vmem:[%s7] sm:$0x1]
    %v447 = vperm.slane %v445, 0
    %v481 = vunpack.c.l.b16 %v413
    %v482 = vunpack.c.l.b16 %v414
    %v483 = vunpack.c.l.b16 %v415
    %v484 = vunpack.c.l.b16 %v416
    %v485 = vunpack.c.l.b16 %v417
    %v486 = vunpack.c.l.b16 %v418
    %v487 = vunpack.c.l.b16 %v419
    %v488 = vunpack.c.l.b16 %v420
    %v489 = vunpack.c.l.b16 %v421
    %v490 = vunpack.c.l.b16 %v422
    %v491 = vunpack.c.l.b16 %v423
    %v492 = vunpack.c.l.b16 %v424
    %v493 = vunpack.c.l.b16 %v425
    %v494 = vunpack.c.l.b16 %v426
    %v495 = vunpack.c.l.b16 %v427
    %v496 = vunpack.c.l.b16 %v428
    %v497 = vunpack.c.l.b16 %v429
    %v498 = vunpack.c.l.b16 %v430
    %v499 = vunpack.c.l.b16 %v431
    %v500 = vunpack.c.l.b16 %v432
    %v501 = vunpack.c.l.b16 %v433
    %v502 = vunpack.c.l.b16 %v434
    %v503 = vunpack.c.l.b16 %v435
    %v504 = vunpack.c.l.b16 %v436
    %v505 = vunpack.c.l.b16 %v437
    %v506 = vunpack.c.l.b16 %v438
    %v507 = vunpack.c.l.b16 %v439
    %v508 = vunpack.c.l.b16 %v440
    %v509 = vunpack.c.l.b16 %v441
    %v510 = vunpack.c.l.b16 %v442
    %v511 = vunpack.c.l.b16 %v443
    %v512 = vunpack.c.l.b16 %v444
    %v513 = vpack.c.b16 %v482, %v481
    %v514 = vpack.c.b16 %v484, %v483
    %v515 = vpack.c.b16 %v486, %v485
    %v516 = vpack.c.b16 %v488, %v487
    %v517 = vpack.c.b16 %v490, %v489
    %v518 = vpack.c.b16 %v492, %v491
    %v519 = vpack.c.b16 %v494, %v493
    %v520 = vpack.c.b16 %v496, %v495
    %v521 = vpack.c.b16 %v498, %v497
    %v522 = vpack.c.b16 %v500, %v499
    %v523 = vpack.c.b16 %v502, %v501
    %v524 = vpack.c.b16 %v504, %v503
    %v525 = vpack.c.b16 %v506, %v505
    %v526 = vpack.c.b16 %v508, %v507
    %v527 = vpack.c.b16 %v510, %v509
    %v528 = vpack.c.b16 %v512, %v511
    %545 = vmatpush.bf16.msra.mxu0 %v520
    %546 = vmatpush.bf16.msra.mxu0 %v519
    %547 = vmatpush.bf16.msra.mxu0 %v518
    %548 = vmatpush.bf16.msra.mxu0 %v517
    %549 = vmatpush.bf16.msra.mxu0 %v516
    %550 = vmatpush.bf16.msra.mxu0 %v515
    %551 = vmatpush.bf16.msra.mxu0 %v514
    %552 = vmatpush.bf16.msra.mxu0 %v513
    %553 = vmatmul.bf16.gmra.mxu0 %v411
    %v554 = vpop.f32.mrf.mxu0
    %v555 = vadd.f32 %v447, %v554
    %v556 = vpop.f32.mrf.mxu0
    %v557 = vadd.f32 %v447, %v556
    %558 = vdwg.mxu0
    %559 = vmatpush.bf16.msra.mxu0 %v528
    %560 = vmatpush.bf16.msra.mxu0 %v527
    %561 = vmatpush.bf16.msra.mxu0 %v526
    %562 = vmatpush.bf16.msra.mxu0 %v525
    %563 = vmatpush.bf16.msra.mxu0 %v524
    %564 = vmatpush.bf16.msra.mxu0 %v523
    %565 = vmatpush.bf16.msra.mxu0 %v522
    %566 = vmatpush.bf16.msra.mxu0 %v521
    %567 = vmatmul.bf16.gmra.mxu0 %v412
    %v568 = vpop.f32.mrf.mxu0
    %v569 = vadd.f32 %v555, %v568
    %v570 = vpop.f32.mrf.mxu0
    %v571 = vadd.f32 %v557, %v570
    %572 = vdwg.mxu0
    %v573 = vtanh.pop %v569
    %v574 = vtanh.pop %v571
    %v575 = vadd.f32 %v573, 1.0
    %v576 = vadd.f32 %v574, 1.0
    %v577 = vmul.f32 %v575, 11.0
    %v578 = vmul.f32 %v576, 11.0
    %v579 = vadd.f32 %v577, -20.0
    %v580 = vadd.f32 %v578, -20.0
    %v581 = vmul.f32 %v579, 1.442695
    %v582 = vpow.pop %v581
    %v583 = vmul.f32 %v580, 1.442695
    %v584 = vpow.pop %v583
    %v585 = vld [vmem:[%s1] sm:$0xff]
    %v586 = vld [vmem:[%s1 + $0x8] sm:$0xff]
    %589 = vrot.lane.b32.xlu0 %v582, 124
    %v590 = vpop.permute.xlu0 %589
    %591 = vrot.lane.b32.xlu0 %v584, 124
    %v592 = vpop.permute.xlu0 %591
    %v595 = vmul.f32 %v585, %v590
    %v596 = vmul.f32 %v586, %v592
    %v597 = vadd.f32 %v569, %v595
    %v598 = vadd.f32 %v571, %v596
    %v599 = vmul.f32 %v585, -0.5
    %v600 = vmul.f32 %v586, -0.5
    %v601 = vmul.f32 %v599, %v585
    %v602 = vmul.f32 %v600, %v586
    %605 = vrot.lane.b32.xlu0 %v579, 124
    %v606 = vpop.permute.xlu0 %605
    %607 = vrot.lane.b32.xlu0 %v580, 124
    %v608 = vpop.permute.xlu0 %607
    %v611 = vsub.f32 %v601, %v606
    %v612 = vsub.f32 %v602, %v608
    %vm613 = vcmask 31744
    %v614 = vsel %vm613, %v611, 0.0
    %615 = vadd.xlane.f32.xlu0 %v614
    %v616 = vpop.xlane.xlu0 %615
    %v617 = vsel %vm613, %v612, 0.0
    %618 = vadd.xlane.f32.xlu0 %v617
    %v619 = vpop.xlane.xlu0 %618
    %v620 = vadd.f32 %v616, -3.675754
    %v621 = vadd.f32 %v619, -3.675754
    %v622 = vtanh.pop %v597
    %v623 = vtanh.pop %v598
    %v624 = vmul.f32 %v622, %v622
    %v625 = vmul.f32 %v623, %v623
    %v626 = vsub.f32 1.0, %v624
    %v627 = vsub.f32 1.0, %v625
    %v628 = vmax.f32 %v626, 0.0
    %v629 = vmax.f32 %v627, 0.0
    %v630 = vadd.f32 %v628, 1e-06
    %v631 = vadd.f32 %v629, 1e-06
    %v632 = vlog2.pop %v630
    %v633 = vmul.f32 %v632, 0.6931472
    %v634 = vlog2.pop %v631
    %v635 = vmul.f32 %v634, 0.6931472
    %v636 = vsel %vm613, %v633, 0.0
    %637 = vadd.xlane.f32.xlu0 %v636
    %v638 = vpop.xlane.xlu0 %637
    %v639 = vsel %vm613, %v635, 0.0
    %640 = vadd.xlane.f32.xlu0 %v639
    %v641 = vpop.xlane.xlu0 %640
    %v642 = vsub.f32 %v620, %v638
    %v643 = vsub.f32 %v621, %v641
    %646 = vrot.lane.b32.xlu0 %v622, 4
    %v647 = vpop.permute.xlu0 %646
    %648 = vrot.lane.b32.xlu0 %v623, 4
    %v649 = vpop.permute.xlu0 %648
    %v652 = vsel %vm613, %v573, %v647
    %v653 = vsel %vm613, %v574, %v649
    %vm654 = vcmask 64512
    %v655 = vsel %vm654, %v652, %v642
    %v656 = vsel %vm654, %v653, %v643
    %vm657 = vcmask 72704
    %v658 = vsel %vm657, %v655, 0.0
    %v659 = vsel %vm657, %v656, 0.0
    %660 = vst [vmem:[#allocation8] sm:$0xff] %v658
    %661 = vst [vmem:[#allocation8 + $0x8] sm:$0xff] %v659
    // Predicated region
    $region46: #{tpu_custom_call.1} parent=1 // pred_check
      _
    $region47: #{tpu_custom_call.1} parent=1 // pred_check_branch
      %663 = sbr.rel (0) target = $region49
    $region48: #{tpu_custom_call.1} parent=1 // pred_region
      %665 = vsyncadd [#allocation4], 0
      %s666 = sshll.u32 [#allocation8], 4
      %s667 = int_to_ptr.vmem [resolvable:$true] %s666
      %s668 = sshll.u32 %s8, 4
      %s669 = int_to_ptr.hbm [resolvable:$true] %s668
      %674 = dma.vmem_to_hbm [thread:$0]  %s667, 256, %s669, [#allocation4], 128, 128, 8
    $region49: #{tpu_custom_call.1} parent=1 // pred_fallthru
      _
    // Predicated region
    $region50: #{tpu_custom_call.1} parent=1 // pred_check
      _
    $region51: #{tpu_custom_call.1} parent=1 // pred_check_branch
      %676 = sbr.rel (0) target = $region53
    $region52: #{tpu_custom_call.1} parent=1 // pred_region
      %678 = dma.done [#allocation4], 256
    $region53: #{tpu_custom_call.1} parent=1 // pred_fallthru
      _
    %679 = vsyncpa [#allocation3], 1
    %680 = vsyncpa [#allocation6], 1
    %681 = vsyncpa [#allocation4], 1

</llo_original>
